<compile_context>
chip_gen: v6e
topology: v6e:2x2x1
jax: 0.10.0
libtpu: 0.0.40
codegen_flags: <defaults>
</compile_context>

<pallas_src>
import functools

import jax
import jax.numpy as jnp
from jax.experimental import pallas as pl
from jax.experimental.pallas import tpu as pltpu


# Per-block *input* footprint target. Pipelined VMEM use ~= 2*(1 + 1/pool^2)*TARGET,
# comfortably inside the 32 MiB default scoped VMEM on v5e/v6e/v7x.
_TARGET_BLOCK_BYTES = 8 * 1024 * 1024


def _maxpool_kernel(x_ref, o_ref, *, pool: int):
    # x_ref block: (Th*pool, W,  Cb)  -- channels on the lane axis (dense loads/stores)
    # o_ref block: (Th,      Wp, Cb)
    x = x_ref[...]
    thp, w, cb = x.shape
    th = thp // pool
    wp = w // pool

    # Pool over H: split only the *leading* dim (no sublane/lane relayout) and take
    # unrolled per-lane maxima on the VPU.
    xr = x.reshape(th, pool, w, cb)
    acc = xr[:, 0]
    for i in range(1, pool):
        acc = jnp.maximum(acc, xr[:, i])            # (Th, W, Cb)

    # Pool over W (sublane axis): fold W -> (Wp, pool); lanes (Cb) untouched, then
    # unrolled maxima over the small pool factor.
    accr = acc.reshape(th, wp, pool, cb)
    out = accr[:, :, 0, :]
    for j in range(1, pool):
        out = jnp.maximum(out, accr[:, :, j, :])    # (Th, Wp, Cb)

    o_ref[...] = out


def _pick_channel_block(nc: int, w: int, pool: int, dbytes: int) -> int:
    """Lane-dim block: a multiple of 128 that divides N*C (or the full extent)."""
    if nc % 128 != 0:
        return nc  # must take the full (non-128-aligned) extent to satisfy tiling rules
    cands = [c for c in range(128, nc + 1, 128) if nc % c == 0]
    best = cands[0]
    for c in cands:
        if pool * w * c * dbytes <= _TARGET_BLOCK_BYTES:
            best = c
    return best


def _pick_row_block(hp: int, w: int, cblk: int, pool: int, dbytes: int) -> int:
    """Largest divisor Th of Hp whose (Th*pool, W, Cblk) input block fits the budget."""
    best = 1
    for th in range(1, hp + 1):
        if hp % th != 0:
            continue
        if th * pool * w * cblk * dbytes <= _TARGET_BLOCK_BYTES:
            best = th
    return best


def max_pool2d(x: jax.Array, pool_size: int) -> jax.Array:
    """Equivalent of nn.MaxPool2d(kernel_size=pool_size, stride=pool_size) on NCHW input."""
    N, C, H, W = x.shape
    p = pool_size
    assert H % p == 0 and W % p == 0, (
        "This kernel assumes spatial dims divisible by pool_size "
        "(PyTorch floor-mode would otherwise crop the remainder)."
    )
    Hp, Wp = H // p, W // p
    NC = N * C
    dbytes = jnp.dtype(x.dtype).itemsize

    cblk = _pick_channel_block(NC, W, p, dbytes)
    th = _pick_row_block(Hp, W, cblk, p, dbytes)
    grid = (Hp // th, NC // cblk)

    # Channel-last layout plumbing (done by XLA outside the kernel).
    x_cl = jnp.transpose(x.reshape(NC, H, W), (1, 2, 0))  # (H, W, NC)

    kernel = functools.partial(_maxpool_kernel, pool=p)

    cost = pl.CostEstimate(
        flops=int(NC * H * W),  # ~one compare per input element
        transcendentals=0,
        bytes_accessed=int((H * W + Hp * Wp) * NC * dbytes),
    )

    out_cl = pl.pallas_call(
        kernel,
        out_shape=jax.ShapeDtypeStruct((Hp, Wp, NC), x.dtype),
        grid_spec=pltpu.PrefetchScalarGridSpec(
            num_scalar_prefetch=0,
            grid=grid,
            in_specs=[pl.BlockSpec((th * p, W, cblk), lambda h, c: (h, 0, c))],
            out_specs=pl.BlockSpec((th, Wp, cblk), lambda h, c: (h, 0, c)),
        ),
        compiler_params=pltpu.CompilerParams(
            dimension_semantics=("parallel", "parallel"),
        ),
        cost_estimate=cost,
    )(x_cl)

    return jnp.transpose(out_cl, (2, 0, 1)).reshape(N, C, Hp, Wp)


def _reference_max_pool2d(x: jax.Array, pool_size: int) -> jax.Array:
    N, C, H, W = x.shape
    p = pool_size
    return jnp.max(x.reshape(N, C, H // p, p, W // p, p), axis=(3, 5))


if __name__ == "__main__":
    key = jax.random.PRNGKey(0)
    N, C, H, W = 2, 4, 16, 16
    pool_size = 2

    x = jax.random.normal(key, (N, C, H, W), dtype=jnp.float32)

    out = jax.block_until_ready(max_pool2d(x, pool_size))

    ref = _reference_max_pool2d(x, pool_size)
    assert out.shape == (N, C, H // pool_size, W // pool_size), out.shape
    assert out.dtype == x.dtype
    assert jnp.allclose(out, ref), "Pallas max-pool mismatch vs reference"

    print("KERNEL_OK")
</pallas_src>

<mosaic_0001>
module attributes {stable_mosaic.version = 11 : i64} {
  func.func @_maxpool_kernel(%arg0: i32, %arg1: i32, %arg2: memref<16x16x8xf32, #tpu.memory_space<vmem>>, %arg3: memref<8x8x8xf32, #tpu.memory_space<vmem>>) attributes {dimension_semantics = [#tpu.dimension_semantics<parallel>, #tpu.dimension_semantics<parallel>], iteration_bounds = array<i64: 1, 1>, scalar_prefetch = 0 : i64, scratch_operands = 0 : i64, tpu.core_type = #tpu.core_type<tc>, window_params = [{transform_indices = @transform_0, window_bounds = array<i64: 16, 16, 8>}, {transform_indices = @transform_1, window_bounds = array<i64: 8, 8, 8>}]} {
    %c0 = arith.constant 0 : index
    %c0_0 = arith.constant 0 : index
    %c0_1 = arith.constant 0 : index
    %0 = vector.load %arg2[%c0, %c0_0, %c0_1] : memref<16x16x8xf32, #tpu.memory_space<vmem>>, vector<16x16x8xf32>
    %1 = vector.shape_cast %0 : vector<16x16x8xf32> to vector<8x2x16x8xf32>
    %2 = vector.extract_strided_slice %1 {offsets = [0, 0, 0, 0], sizes = [8, 1, 16, 8], strides = [1, 1, 1, 1]} : vector<8x2x16x8xf32> to vector<8x1x16x8xf32>
    %3 = vector.shape_cast %2 : vector<8x1x16x8xf32> to vector<8x16x8xf32>
    %4 = vector.extract_strided_slice %1 {offsets = [0, 1, 0, 0], sizes = [8, 1, 16, 8], strides = [1, 1, 1, 1]} : vector<8x2x16x8xf32> to vector<8x1x16x8xf32>
    %5 = vector.shape_cast %4 : vector<8x1x16x8xf32> to vector<8x16x8xf32>
    %6 = arith.maximumf %3, %5 : vector<8x16x8xf32>
    %7 = vector.shape_cast %6 : vector<8x16x8xf32> to vector<8x8x2x8xf32>
    %8 = vector.extract_strided_slice %7 {offsets = [0, 0, 0, 0], sizes = [8, 8, 1, 8], strides = [1, 1, 1, 1]} : vector<8x8x2x8xf32> to vector<8x8x1x8xf32>
    %9 = vector.shape_cast %8 : vector<8x8x1x8xf32> to vector<8x8x8xf32>
    %10 = vector.extract_strided_slice %7 {offsets = [0, 0, 1, 0], sizes = [8, 8, 1, 8], strides = [1, 1, 1, 1]} : vector<8x8x2x8xf32> to vector<8x8x1x8xf32>
    %11 = vector.shape_cast %10 : vector<8x8x1x8xf32> to vector<8x8x8xf32>
    %12 = arith.maximumf %9, %11 : vector<8x8x8xf32>
    %c0_2 = arith.constant 0 : index
    %c0_3 = arith.constant 0 : index
    %c0_4 = arith.constant 0 : index
    %13 = vector.load %arg3[%c0_2, %c0_3, %c0_4] : memref<8x8x8xf32, #tpu.memory_space<vmem>>, vector<8x8x8xf32>
    tpu.vector_store %arg3[%c0_2, %c0_3, %c0_4], %12 {strides = array<i32>} : memref<8x8x8xf32, #tpu.memory_space<vmem>>, vector<8x8x8xf32>,
    return
  }
  func.func @transform_0(%arg0: i32, %arg1: i32) -> (i32, i32, i32) {
    %c0_i32 = arith.constant 0 : i32
    %c0_i32_0 = arith.constant 0 : i32
    return %arg0, %c0_i32, %arg1 : i32, i32, i32
  }
  func.func @transform_1(%arg0: i32, %arg1: i32) -> (i32, i32, i32) {
    %c0_i32 = arith.constant 0 : i32
    %c0_i32_0 = arith.constant 0 : i32
    return %arg0, %c0_i32, %arg1 : i32, i32, i32
  }
}

</mosaic_0001>

<llo_original>
// kernel: tpu_custom_call.1
$region0: #{tpu_custom_call.1}
  #allocation0 [shape = 'u32[]', space=smem, size = 0x4, offset = 0x4, fixed_abs, tag = 'smem constant byte address 0x4 - core index']
  #allocation1 [shape = 'u32[144,128]{1,0:T(1,128)}', space=vmem, size = 0x12000, scoped, tag = 'internal scratch']
  %s0 = inlined_call_operand.vmem [shape: f32[16,16,8], index: 0, kind: input, shape index: {}]
  %s1 = inlined_call_operand.hbm [shape: f32[8,8,8], index: 1, kind: output, shape index: {}]
  %s2 = sld [smem:[#allocation0]]
  $region14: #{tpu_custom_call.1} parent=0
    _
  %s4 = ssub.s32 1, %s2
  %s5 = scalar_select 0, %s4, %s2
  $region1: #{tpu_custom_call.1} parent=0
    #allocation2 [shape = 'u8[32768]{0}', space=vmem, size = 0x8000, scoped, tag = 'output window, operand 0, single buffered']
    #allocation3 [shape = 's32[1]{0}', space=sflag, size = 0x4, scoped, tag = 'scoped memory for tpu_custom_call.1']
    %6 = vsyncpa [#allocation3], 0
    // Predicated region
    $region2: #{tpu_custom_call.1} parent=1 // pred_check
      _
    $region3: #{tpu_custom_call.1} parent=1 // pred_check_branch
      %8 = sbr.rel (0) target = $region5
    $region4: #{tpu_custom_call.1} parent=1 // pred_region
      _
    $region5: #{tpu_custom_call.1} parent=1 // pred_fallthru
      _
    %v9 = vld [vmem:[%s0] sm:$0xff]
    %v10 = vld [vmem:[%s0 + $0x8] sm:$0xff]
    %v11 = vld [vmem:[%s0 + $0x10] sm:$0xff]
    %v12 = vld [vmem:[%s0 + $0x18] sm:$0xff]
    %v13 = vld [vmem:[%s0 + $0x20] sm:$0xff]
    %v14 = vld [vmem:[%s0 + $0x28] sm:$0xff]
    %v15 = vld [vmem:[%s0 + $0x30] sm:$0xff]
    %v16 = vld [vmem:[%s0 + $0x38] sm:$0xff]
    %v17 = vld [vmem:[%s0 + $0x40] sm:$0xff]
    %v18 = vld [vmem:[%s0 + $0x48] sm:$0xff]
    %v19 = vld [vmem:[%s0 + $0x50] sm:$0xff]
    %v20 = vld [vmem:[%s0 + $0x58] sm:$0xff]
    %v21 = vld [vmem:[%s0 + $0x60] sm:$0xff]
    %v22 = vld [vmem:[%s0 + $0x68] sm:$0xff]
    %v23 = vld [vmem:[%s0 + $0x70] sm:$0xff]
    %v24 = vld [vmem:[%s0 + $0x78] sm:$0xff]
    %v25 = vld [vmem:[%s0 + $0x80] sm:$0xff]
    %v26 = vld [vmem:[%s0 + $0x88] sm:$0xff]
    %v27 = vld [vmem:[%s0 + $0x90] sm:$0xff]
    %v28 = vld [vmem:[%s0 + $0x98] sm:$0xff]
    %v29 = vld [vmem:[%s0 + $0xa0] sm:$0xff]
    %v30 = vld [vmem:[%s0 + $0xa8] sm:$0xff]
    %v31 = vld [vmem:[%s0 + $0xb0] sm:$0xff]
    %v32 = vld [vmem:[%s0 + $0xb8] sm:$0xff]
    %v33 = vld [vmem:[%s0 + $0xc0] sm:$0xff]
    %v34 = vld [vmem:[%s0 + $0xc8] sm:$0xff]
    %v35 = vld [vmem:[%s0 + $0xd0] sm:$0xff]
    %v36 = vld [vmem:[%s0 + $0xd8] sm:$0xff]
    %v37 = vld [vmem:[%s0 + $0xe0] sm:$0xff]
    %v38 = vld [vmem:[%s0 + $0xe8] sm:$0xff]
    %v39 = vld [vmem:[%s0 + $0xf0] sm:$0xff]
    %v40 = vld [vmem:[%s0 + $0xf8] sm:$0xff]
    %v41 = vmax.f32 %v9, %v11
    %v42 = vmax.f32 %v10, %v12
    %v43 = vmax.f32 %v13, %v15
    %v44 = vmax.f32 %v14, %v16
    %v45 = vmax.f32 %v17, %v19
    %v46 = vmax.f32 %v18, %v20
    %v47 = vmax.f32 %v21, %v23
    %v48 = vmax.f32 %v22, %v24
    %v49 = vmax.f32 %v25, %v27
    %v50 = vmax.f32 %v26, %v28
    %v51 = vmax.f32 %v29, %v31
    %v52 = vmax.f32 %v30, %v32
    %v53 = vmax.f32 %v33, %v35
    %v54 = vmax.f32 %v34, %v36
    %v55 = vmax.f32 %v37, %v39
    %v56 = vmax.f32 %v38, %v40
    %v73 = vcombine.high %v41, %v41
    %v75 = vunpack.c.l.s4 1983009808
    %v76 = vunpack.c.0.s8 %v75
    %v77 = vlaneseq
    %v78 = vshrl.u32 %v77, 7
    %v79 = vsub.s32 %v76, %v78
    %v80 = vrot.slane %v41, %v79
    %v82 = vunpack.c.l.s4 1983009808
    %v83 = vunpack.c.0.s8 %v82
    %v84 = vlaneseq
    %v85 = vshrl.u32 %v84, 7
    %v86 = vsub.s32 %v83, %v85
    %v87 = vrot.slane %v73, %v86
    %v88 = vcombine.high %v80, %v80
    %v89 = vcombine.high %v87, %v87
    %v90 = vcombine.high %v42, %v42
    %v92 = vunpack.c.l.s4 1983009808
    %v93 = vunpack.c.0.s8 %v92
    %v94 = vlaneseq
    %v95 = vshrl.u32 %v94, 7
    %v96 = vsub.s32 %v93, %v95
    %v97 = vrot.slane %v42, %v96
    %v99 = vunpack.c.l.s4 1983009808
    %v100 = vunpack.c.0.s8 %v99
    %v101 = vlaneseq
    %v102 = vshrl.u32 %v101, 7
    %v103 = vsub.s32 %v100, %v102
    %v104 = vrot.slane %v90, %v103
    %v105 = vcombine.high %v97, %v97
    %v106 = vcombine.high %v104, %v104
    %v107 = vcombine.high %v43, %v43
    %v109 = vunpack.c.l.s4 1983009808
    %v110 = vunpack.c.0.s8 %v109
    %v111 = vlaneseq
    %v112 = vshrl.u32 %v111, 7
    %v113 = vsub.s32 %v110, %v112
    %v114 = vrot.slane %v43, %v113
    %v116 = vunpack.c.l.s4 1983009808
    %v117 = vunpack.c.0.s8 %v116
    %v118 = vlaneseq
    %v119 = vshrl.u32 %v118, 7
    %v120 = vsub.s32 %v117, %v119
    %v121 = vrot.slane %v107, %v120
    %v122 = vcombine.high %v114, %v114
    %v123 = vcombine.high %v121, %v121
    %v124 = vcombine.high %v44, %v44
    %v126 = vunpack.c.l.s4 1983009808
    %v127 = vunpack.c.0.s8 %v126
    %v128 = vlaneseq
    %v129 = vshrl.u32 %v128, 7
    %v130 = vsub.s32 %v127, %v129
    %v131 = vrot.slane %v44, %v130
    %v133 = vunpack.c.l.s4 1983009808
    %v134 = vunpack.c.0.s8 %v133
    %v135 = vlaneseq
    %v136 = vshrl.u32 %v135, 7
    %v137 = vsub.s32 %v134, %v136
    %v138 = vrot.slane %v124, %v137
    %v139 = vcombine.high %v131, %v131
    %v140 = vcombine.high %v138, %v138
    %v141 = vcombine.high %v45, %v45
    %v143 = vunpack.c.l.s4 1983009808
    %v144 = vunpack.c.0.s8 %v143
    %v145 = vlaneseq
    %v146 = vshrl.u32 %v145, 7
    %v147 = vsub.s32 %v144, %v146
    %v148 = vrot.slane %v45, %v147
    %v150 = vunpack.c.l.s4 1983009808
    %v151 = vunpack.c.0.s8 %v150
    %v152 = vlaneseq
    %v153 = vshrl.u32 %v152, 7
    %v154 = vsub.s32 %v151, %v153
    %v155 = vrot.slane %v141, %v154
    %v156 = vcombine.high %v148, %v148
    %v157 = vcombine.high %v155, %v155
    %v158 = vcombine.high %v46, %v46
    %v160 = vunpack.c.l.s4 1983009808
    %v161 = vunpack.c.0.s8 %v160
    %v162 = vlaneseq
    %v163 = vshrl.u32 %v162, 7
    %v164 = vsub.s32 %v161, %v163
    %v165 = vrot.slane %v46, %v164
    %v167 = vunpack.c.l.s4 1983009808
    %v168 = vunpack.c.0.s8 %v167
    %v169 = vlaneseq
    %v170 = vshrl.u32 %v169, 7
    %v171 = vsub.s32 %v168, %v170
    %v172 = vrot.slane %v158, %v171
    %v173 = vcombine.high %v165, %v165
    %v174 = vcombine.high %v172, %v172
    %v175 = vcombine.high %v47, %v47
    %v177 = vunpack.c.l.s4 1983009808
    %v178 = vunpack.c.0.s8 %v177
    %v179 = vlaneseq
    %v180 = vshrl.u32 %v179, 7
    %v181 = vsub.s32 %v178, %v180
    %v182 = vrot.slane %v47, %v181
    %v184 = vunpack.c.l.s4 1983009808
    %v185 = vunpack.c.0.s8 %v184
    %v186 = vlaneseq
    %v187 = vshrl.u32 %v186, 7
    %v188 = vsub.s32 %v185, %v187
    %v189 = vrot.slane %v175, %v188
    %v190 = vcombine.high %v182, %v182
    %v191 = vcombine.high %v189, %v189
    %v192 = vcombine.high %v48, %v48
    %v194 = vunpack.c.l.s4 1983009808
    %v195 = vunpack.c.0.s8 %v194
    %v196 = vlaneseq
    %v197 = vshrl.u32 %v196, 7
    %v198 = vsub.s32 %v195, %v197
    %v199 = vrot.slane %v48, %v198
    %v201 = vunpack.c.l.s4 1983009808
    %v202 = vunpack.c.0.s8 %v201
    %v203 = vlaneseq
    %v204 = vshrl.u32 %v203, 7
    %v205 = vsub.s32 %v202, %v204
    %v206 = vrot.slane %v192, %v205
    %v207 = vcombine.high %v199, %v199
    %v208 = vcombine.high %v206, %v206
    %v209 = vcombine.high %v49, %v49
    %v211 = vunpack.c.l.s4 1983009808
    %v212 = vunpack.c.0.s8 %v211
    %v213 = vlaneseq
    %v214 = vshrl.u32 %v213, 7
    %v215 = vsub.s32 %v212, %v214
    %v216 = vrot.slane %v49, %v215
    %v218 = vunpack.c.l.s4 1983009808
    %v219 = vunpack.c.0.s8 %v218
    %v220 = vlaneseq
    %v221 = vshrl.u32 %v220, 7
    %v222 = vsub.s32 %v219, %v221
    %v223 = vrot.slane %v209, %v222
    %v224 = vcombine.high %v216, %v216
    %v225 = vcombine.high %v223, %v223
    %v226 = vcombine.high %v50, %v50
    %v228 = vunpack.c.l.s4 1983009808
    %v229 = vunpack.c.0.s8 %v228
    %v230 = vlaneseq
    %v231 = vshrl.u32 %v230, 7
    %v232 = vsub.s32 %v229, %v231
    %v233 = vrot.slane %v50, %v232
    %v235 = vunpack.c.l.s4 1983009808
    %v236 = vunpack.c.0.s8 %v235
    %v237 = vlaneseq
    %v238 = vshrl.u32 %v237, 7
    %v239 = vsub.s32 %v236, %v238
    %v240 = vrot.slane %v226, %v239
    %v241 = vcombine.high %v233, %v233
    %v242 = vcombine.high %v240, %v240
    %v243 = vcombine.high %v51, %v51
    %v245 = vunpack.c.l.s4 1983009808
    %v246 = vunpack.c.0.s8 %v245
    %v247 = vlaneseq
    %v248 = vshrl.u32 %v247, 7
    %v249 = vsub.s32 %v246, %v248
    %v250 = vrot.slane %v51, %v249
    %v252 = vunpack.c.l.s4 1983009808
    %v253 = vunpack.c.0.s8 %v252
    %v254 = vlaneseq
    %v255 = vshrl.u32 %v254, 7
    %v256 = vsub.s32 %v253, %v255
    %v257 = vrot.slane %v243, %v256
    %v258 = vcombine.high %v250, %v250
    %v259 = vcombine.high %v257, %v257
    %v260 = vcombine.high %v52, %v52
    %v262 = vunpack.c.l.s4 1983009808
    %v263 = vunpack.c.0.s8 %v262
    %v264 = vlaneseq
    %v265 = vshrl.u32 %v264, 7
    %v266 = vsub.s32 %v263, %v265
    %v267 = vrot.slane %v52, %v266
    %v269 = vunpack.c.l.s4 1983009808
    %v270 = vunpack.c.0.s8 %v269
    %v271 = vlaneseq
    %v272 = vshrl.u32 %v271, 7
    %v273 = vsub.s32 %v270, %v272
    %v274 = vrot.slane %v260, %v273
    %v275 = vcombine.high %v267, %v267
    %v276 = vcombine.high %v274, %v274
    %v277 = vcombine.high %v53, %v53
    %v279 = vunpack.c.l.s4 1983009808
    %v280 = vunpack.c.0.s8 %v279
    %v281 = vlaneseq
    %v282 = vshrl.u32 %v281, 7
    %v283 = vsub.s32 %v280, %v282
    %v284 = vrot.slane %v53, %v283
    %v286 = vunpack.c.l.s4 1983009808
    %v287 = vunpack.c.0.s8 %v286
    %v288 = vlaneseq
    %v289 = vshrl.u32 %v288, 7
    %v290 = vsub.s32 %v287, %v289
    %v291 = vrot.slane %v277, %v290
    %v292 = vcombine.high %v284, %v284
    %v293 = vcombine.high %v291, %v291
    %v294 = vcombine.high %v54, %v54
    %v296 = vunpack.c.l.s4 1983009808
    %v297 = vunpack.c.0.s8 %v296
    %v298 = vlaneseq
    %v299 = vshrl.u32 %v298, 7
    %v300 = vsub.s32 %v297, %v299
    %v301 = vrot.slane %v54, %v300
    %v303 = vunpack.c.l.s4 1983009808
    %v304 = vunpack.c.0.s8 %v303
    %v305 = vlaneseq
    %v306 = vshrl.u32 %v305, 7
    %v307 = vsub.s32 %v304, %v306
    %v308 = vrot.slane %v294, %v307
    %v309 = vcombine.high %v301, %v301
    %v310 = vcombine.high %v308, %v308
    %v311 = vcombine.high %v55, %v55
    %v313 = vunpack.c.l.s4 1983009808
    %v314 = vunpack.c.0.s8 %v313
    %v315 = vlaneseq
    %v316 = vshrl.u32 %v315, 7
    %v317 = vsub.s32 %v314, %v316
    %v318 = vrot.slane %v55, %v317
    %v320 = vunpack.c.l.s4 1983009808
    %v321 = vunpack.c.0.s8 %v320
    %v322 = vlaneseq
    %v323 = vshrl.u32 %v322, 7
    %v324 = vsub.s32 %v321, %v323
    %v325 = vrot.slane %v311, %v324
    %v326 = vcombine.high %v318, %v318
    %v327 = vcombine.high %v325, %v325
    %v328 = vcombine.high %v56, %v56
    %v330 = vunpack.c.l.s4 1983009808
    %v331 = vunpack.c.0.s8 %v330
    %v332 = vlaneseq
    %v333 = vshrl.u32 %v332, 7
    %v334 = vsub.s32 %v331, %v333
    %v335 = vrot.slane %v56, %v334
    %v337 = vunpack.c.l.s4 1983009808
    %v338 = vunpack.c.0.s8 %v337
    %v339 = vlaneseq
    %v340 = vshrl.u32 %v339, 7
    %v341 = vsub.s32 %v338, %v340
    %v342 = vrot.slane %v328, %v341
    %v343 = vcombine.high %v335, %v335
    %v344 = vcombine.high %v342, %v342
    %v409 = vrot.slane %v80, 7
    %v410 = vrot.slane %v409, 2
    %v411 = vrot.slane %v88, 7
    %v412 = vrot.slane %v411, 2
    %v413 = vrot.slane %v87, 7
    %v414 = vrot.slane %v413, 2
    %v415 = vrot.slane %v89, 7
    %v416 = vrot.slane %v415, 2
    %v417 = vrot.slane %v97, 7
    %v418 = vrot.slane %v417, 2
    %v419 = vrot.slane %v105, 7
    %v420 = vrot.slane %v419, 2
    %v421 = vrot.slane %v104, 7
    %v422 = vrot.slane %v421, 2
    %v423 = vrot.slane %v106, 7
    %v424 = vrot.slane %v423, 2
    %v425 = vrot.slane %v114, 7
    %v426 = vrot.slane %v425, 2
    %v427 = vrot.slane %v122, 7
    %v428 = vrot.slane %v427, 2
    %v429 = vrot.slane %v121, 7
    %v430 = vrot.slane %v429, 2
    %v431 = vrot.slane %v123, 7
    %v432 = vrot.slane %v431, 2
    %v433 = vrot.slane %v131, 7
    %v434 = vrot.slane %v433, 2
    %v435 = vrot.slane %v139, 7
    %v436 = vrot.slane %v435, 2
    %v437 = vrot.slane %v138, 7
    %v438 = vrot.slane %v437, 2
    %v439 = vrot.slane %v140, 7
    %v440 = vrot.slane %v439, 2
    %v441 = vrot.slane %v148, 7
    %v442 = vrot.slane %v441, 2
    %v443 = vrot.slane %v156, 7
    %v444 = vrot.slane %v443, 2
    %v445 = vrot.slane %v155, 7
    %v446 = vrot.slane %v445, 2
    %v447 = vrot.slane %v157, 7
    %v448 = vrot.slane %v447, 2
    %v449 = vrot.slane %v165, 7
    %v450 = vrot.slane %v449, 2
    %v451 = vrot.slane %v173, 7
    %v452 = vrot.slane %v451, 2
    %v453 = vrot.slane %v172, 7
    %v454 = vrot.slane %v453, 2
    %v455 = vrot.slane %v174, 7
    %v456 = vrot.slane %v455, 2
    %v457 = vrot.slane %v182, 7
    %v458 = vrot.slane %v457, 2
    %v459 = vrot.slane %v190, 7
    %v460 = vrot.slane %v459, 2
    %v461 = vrot.slane %v189, 7
    %v462 = vrot.slane %v461, 2
    %v463 = vrot.slane %v191, 7
    %v464 = vrot.slane %v463, 2
    %v465 = vrot.slane %v199, 7
    %v466 = vrot.slane %v465, 2
    %v467 = vrot.slane %v207, 7
    %v468 = vrot.slane %v467, 2
    %v469 = vrot.slane %v206, 7
    %v470 = vrot.slane %v469, 2
    %v471 = vrot.slane %v208, 7
    %v472 = vrot.slane %v471, 2
    %v473 = vrot.slane %v216, 7
    %v474 = vrot.slane %v473, 2
    %v475 = vrot.slane %v224, 7
    %v476 = vrot.slane %v475, 2
    %v477 = vrot.slane %v223, 7
    %v478 = vrot.slane %v477, 2
    %v479 = vrot.slane %v225, 7
    %v480 = vrot.slane %v479, 2
    %v481 = vrot.slane %v233, 7
    %v482 = vrot.slane %v481, 2
    %v483 = vrot.slane %v241, 7
    %v484 = vrot.slane %v483, 2
    %v485 = vrot.slane %v240, 7
    %v486 = vrot.slane %v485, 2
    %v487 = vrot.slane %v242, 7
    %v488 = vrot.slane %v487, 2
    %v489 = vrot.slane %v250, 7
    %v490 = vrot.slane %v489, 2
    %v491 = vrot.slane %v258, 7
    %v492 = vrot.slane %v491, 2
    %v493 = vrot.slane %v257, 7
    %v494 = vrot.slane %v493, 2
    %v495 = vrot.slane %v259, 7
    %v496 = vrot.slane %v495, 2
    %v497 = vrot.slane %v267, 7
    %v498 = vrot.slane %v497, 2
    %v499 = vrot.slane %v275, 7
    %v500 = vrot.slane %v499, 2
    %v501 = vrot.slane %v274, 7
    %v502 = vrot.slane %v501, 2
    %v503 = vrot.slane %v276, 7
    %v504 = vrot.slane %v503, 2
    %v505 = vrot.slane %v284, 7
    %v506 = vrot.slane %v505, 2
    %v507 = vrot.slane %v292, 7
    %v508 = vrot.slane %v507, 2
    %v509 = vrot.slane %v291, 7
    %v510 = vrot.slane %v509, 2
    %v511 = vrot.slane %v293, 7
    %v512 = vrot.slane %v511, 2
    %v513 = vrot.slane %v301, 7
    %v514 = vrot.slane %v513, 2
    %v515 = vrot.slane %v309, 7
    %v516 = vrot.slane %v515, 2
    %v517 = vrot.slane %v308, 7
    %v518 = vrot.slane %v517, 2
    %v519 = vrot.slane %v310, 7
    %v520 = vrot.slane %v519, 2
    %v521 = vrot.slane %v318, 7
    %v522 = vrot.slane %v521, 2
    %v523 = vrot.slane %v326, 7
    %v524 = vrot.slane %v523, 2
    %v525 = vrot.slane %v325, 7
    %v526 = vrot.slane %v525, 2
    %v527 = vrot.slane %v327, 7
    %v528 = vrot.slane %v527, 2
    %v529 = vrot.slane %v335, 7
    %v530 = vrot.slane %v529, 2
    %v531 = vrot.slane %v343, 7
    %v532 = vrot.slane %v531, 2
    %v533 = vrot.slane %v342, 7
    %v534 = vrot.slane %v533, 2
    %v535 = vrot.slane %v344, 7
    %v536 = vrot.slane %v535, 2
    %v601 = vmax.f32 %v80, %v410
    %v602 = vmax.f32 %v88, %v412
    %v603 = vmax.f32 %v87, %v414
    %v604 = vmax.f32 %v89, %v416
    %v605 = vmax.f32 %v97, %v418
    %v606 = vmax.f32 %v105, %v420
    %v607 = vmax.f32 %v104, %v422
    %v608 = vmax.f32 %v106, %v424
    %v609 = vmax.f32 %v114, %v426
    %v610 = vmax.f32 %v122, %v428
    %v611 = vmax.f32 %v121, %v430
    %v612 = vmax.f32 %v123, %v432
    %v613 = vmax.f32 %v131, %v434
    %v614 = vmax.f32 %v139, %v436
    %v615 = vmax.f32 %v138, %v438
    %v616 = vmax.f32 %v140, %v440
    %v617 = vmax.f32 %v148, %v442
    %v618 = vmax.f32 %v156, %v444
    %v619 = vmax.f32 %v155, %v446
    %v620 = vmax.f32 %v157, %v448
    %v621 = vmax.f32 %v165, %v450
    %v622 = vmax.f32 %v173, %v452
    %v623 = vmax.f32 %v172, %v454
    %v624 = vmax.f32 %v174, %v456
    %v625 = vmax.f32 %v182, %v458
    %v626 = vmax.f32 %v190, %v460
    %v627 = vmax.f32 %v189, %v462
    %v628 = vmax.f32 %v191, %v464
    %v629 = vmax.f32 %v199, %v466
    %v630 = vmax.f32 %v207, %v468
    %v631 = vmax.f32 %v206, %v470
    %v632 = vmax.f32 %v208, %v472
    %v633 = vmax.f32 %v216, %v474
    %v634 = vmax.f32 %v224, %v476
    %v635 = vmax.f32 %v223, %v478
    %v636 = vmax.f32 %v225, %v480
    %v637 = vmax.f32 %v233, %v482
    %v638 = vmax.f32 %v241, %v484
    %v639 = vmax.f32 %v240, %v486
    %v640 = vmax.f32 %v242, %v488
    %v641 = vmax.f32 %v250, %v490
    %v642 = vmax.f32 %v258, %v492
    %v643 = vmax.f32 %v257, %v494
    %v644 = vmax.f32 %v259, %v496
    %v645 = vmax.f32 %v267, %v498
    %v646 = vmax.f32 %v275, %v500
    %v647 = vmax.f32 %v274, %v502
    %v648 = vmax.f32 %v276, %v504
    %v649 = vmax.f32 %v284, %v506
    %v650 = vmax.f32 %v292, %v508
    %v651 = vmax.f32 %v291, %v510
    %v652 = vmax.f32 %v293, %v512
    %v653 = vmax.f32 %v301, %v514
    %v654 = vmax.f32 %v309, %v516
    %v655 = vmax.f32 %v308, %v518
    %v656 = vmax.f32 %v310, %v520
    %v657 = vmax.f32 %v318, %v522
    %v658 = vmax.f32 %v326, %v524
    %v659 = vmax.f32 %v325, %v526
    %v660 = vmax.f32 %v327, %v528
    %v661 = vmax.f32 %v335, %v530
    %v662 = vmax.f32 %v343, %v532
    %v663 = vmax.f32 %v342, %v534
    %v664 = vmax.f32 %v344, %v536
    %v729 = vlaneseq
    %v730 = vshrl.u32 %v729, 7
    %v731 = vsub.s32 0, %v730
    %v732 = vrot.slane %v601, %v731
    %v733 = vlaneseq
    %v734 = vshrl.u32 %v733, 7
    %v735 = vsub.s32 0, %v734
    %v736 = vrot.slane %v602, %v735
    %v737 = vlaneseq
    %v738 = vshrl.u32 %v737, 7
    %v739 = vsub.s32 0, %v738
    %v740 = vrot.slane %v603, %v739
    %v741 = vlaneseq
    %v742 = vshrl.u32 %v741, 7
    %v743 = vsub.s32 0, %v742
    %v744 = vrot.slane %v604, %v743
    %v745 = vlaneseq
    %v746 = vshrl.u32 %v745, 7
    %v747 = vsub.s32 0, %v746
    %v748 = vrot.slane %v605, %v747
    %v749 = vlaneseq
    %v750 = vshrl.u32 %v749, 7
    %v751 = vsub.s32 0, %v750
    %v752 = vrot.slane %v606, %v751
    %v753 = vlaneseq
    %v754 = vshrl.u32 %v753, 7
    %v755 = vsub.s32 0, %v754
    %v756 = vrot.slane %v607, %v755
    %v757 = vlaneseq
    %v758 = vshrl.u32 %v757, 7
    %v759 = vsub.s32 0, %v758
    %v760 = vrot.slane %v608, %v759
    %v761 = vlaneseq
    %v762 = vshrl.u32 %v761, 7
    %v763 = vsub.s32 0, %v762
    %v764 = vrot.slane %v609, %v763
    %v765 = vlaneseq
    %v766 = vshrl.u32 %v765, 7
    %v767 = vsub.s32 0, %v766
    %v768 = vrot.slane %v610, %v767
    %v769 = vlaneseq
    %v770 = vshrl.u32 %v769, 7
    %v771 = vsub.s32 0, %v770
    %v772 = vrot.slane %v611, %v771
    %v773 = vlaneseq
    %v774 = vshrl.u32 %v773, 7
    %v775 = vsub.s32 0, %v774
    %v776 = vrot.slane %v612, %v775
    %v777 = vlaneseq
    %v778 = vshrl.u32 %v777, 7
    %v779 = vsub.s32 0, %v778
    %v780 = vrot.slane %v613, %v779
    %v781 = vlaneseq
    %v782 = vshrl.u32 %v781, 7
    %v783 = vsub.s32 0, %v782
    %v784 = vrot.slane %v614, %v783
    %v785 = vlaneseq
    %v786 = vshrl.u32 %v785, 7
    %v787 = vsub.s32 0, %v786
    %v788 = vrot.slane %v615, %v787
    %v789 = vlaneseq
    %v790 = vshrl.u32 %v789, 7
    %v791 = vsub.s32 0, %v790
    %v792 = vrot.slane %v616, %v791
    %v793 = vlaneseq
    %v794 = vshrl.u32 %v793, 7
    %v795 = vsub.s32 0, %v794
    %v796 = vrot.slane %v617, %v795
    %v797 = vlaneseq
    %v798 = vshrl.u32 %v797, 7
    %v799 = vsub.s32 0, %v798
    %v800 = vrot.slane %v618, %v799
    %v801 = vlaneseq
    %v802 = vshrl.u32 %v801, 7
    %v803 = vsub.s32 0, %v802
    %v804 = vrot.slane %v619, %v803
    %v805 = vlaneseq
    %v806 = vshrl.u32 %v805, 7
    %v807 = vsub.s32 0, %v806
    %v808 = vrot.slane %v620, %v807
    %v809 = vlaneseq
    %v810 = vshrl.u32 %v809, 7
    %v811 = vsub.s32 0, %v810
    %v812 = vrot.slane %v621, %v811
    %v813 = vlaneseq
    %v814 = vshrl.u32 %v813, 7
    %v815 = vsub.s32 0, %v814
    %v816 = vrot.slane %v622, %v815
    %v817 = vlaneseq
    %v818 = vshrl.u32 %v817, 7
    %v819 = vsub.s32 0, %v818
    %v820 = vrot.slane %v623, %v819
    %v821 = vlaneseq
    %v822 = vshrl.u32 %v821, 7
    %v823 = vsub.s32 0, %v822
    %v824 = vrot.slane %v624, %v823
    %v825 = vlaneseq
    %v826 = vshrl.u32 %v825, 7
    %v827 = vsub.s32 0, %v826
    %v828 = vrot.slane %v625, %v827
    %v829 = vlaneseq
    %v830 = vshrl.u32 %v829, 7
    %v831 = vsub.s32 0, %v830
    %v832 = vrot.slane %v626, %v831
    %v833 = vlaneseq
    %v834 = vshrl.u32 %v833, 7
    %v835 = vsub.s32 0, %v834
    %v836 = vrot.slane %v627, %v835
    %v837 = vlaneseq
    %v838 = vshrl.u32 %v837, 7
    %v839 = vsub.s32 0, %v838
    %v840 = vrot.slane %v628, %v839
    %v841 = vlaneseq
    %v842 = vshrl.u32 %v841, 7
    %v843 = vsub.s32 0, %v842
    %v844 = vrot.slane %v629, %v843
    %v845 = vlaneseq
    %v846 = vshrl.u32 %v845, 7
    %v847 = vsub.s32 0, %v846
    %v848 = vrot.slane %v630, %v847
    %v849 = vlaneseq
    %v850 = vshrl.u32 %v849, 7
    %v851 = vsub.s32 0, %v850
    %v852 = vrot.slane %v631, %v851
    %v853 = vlaneseq
    %v854 = vshrl.u32 %v853, 7
    %v855 = vsub.s32 0, %v854
    %v856 = vrot.slane %v632, %v855
    %v857 = vlaneseq
    %v858 = vshrl.u32 %v857, 7
    %v859 = vsub.s32 0, %v858
    %v860 = vrot.slane %v633, %v859
    %v861 = vlaneseq
    %v862 = vshrl.u32 %v861, 7
    %v863 = vsub.s32 0, %v862
    %v864 = vrot.slane %v634, %v863
    %v865 = vlaneseq
    %v866 = vshrl.u32 %v865, 7
    %v867 = vsub.s32 0, %v866
    %v868 = vrot.slane %v635, %v867
    %v869 = vlaneseq
    %v870 = vshrl.u32 %v869, 7
    %v871 = vsub.s32 0, %v870
    %v872 = vrot.slane %v636, %v871
    %v873 = vlaneseq
    %v874 = vshrl.u32 %v873, 7
    %v875 = vsub.s32 0, %v874
    %v876 = vrot.slane %v637, %v875
    %v877 = vlaneseq
    %v878 = vshrl.u32 %v877, 7
    %v879 = vsub.s32 0, %v878
    %v880 = vrot.slane %v638, %v879
    %v881 = vlaneseq
    %v882 = vshrl.u32 %v881, 7
    %v883 = vsub.s32 0, %v882
    %v884 = vrot.slane %v639, %v883
    %v885 = vlaneseq
    %v886 = vshrl.u32 %v885, 7
    %v887 = vsub.s32 0, %v886
    %v888 = vrot.slane %v640, %v887
    %v889 = vlaneseq
    %v890 = vshrl.u32 %v889, 7
    %v891 = vsub.s32 0, %v890
    %v892 = vrot.slane %v641, %v891
    %v893 = vlaneseq
    %v894 = vshrl.u32 %v893, 7
    %v895 = vsub.s32 0, %v894
    %v896 = vrot.slane %v642, %v895
    %v897 = vlaneseq
    %v898 = vshrl.u32 %v897, 7
    %v899 = vsub.s32 0, %v898
    %v900 = vrot.slane %v643, %v899
    %v901 = vlaneseq
    %v902 = vshrl.u32 %v901, 7
    %v903 = vsub.s32 0, %v902
    %v904 = vrot.slane %v644, %v903
    %v905 = vlaneseq
    %v906 = vshrl.u32 %v905, 7
    %v907 = vsub.s32 0, %v906
    %v908 = vrot.slane %v645, %v907
    %v909 = vlaneseq
    %v910 = vshrl.u32 %v909, 7
    %v911 = vsub.s32 0, %v910
    %v912 = vrot.slane %v646, %v911
    %v913 = vlaneseq
    %v914 = vshrl.u32 %v913, 7
    %v915 = vsub.s32 0, %v914
    %v916 = vrot.slane %v647, %v915
    %v917 = vlaneseq
    %v918 = vshrl.u32 %v917, 7
    %v919 = vsub.s32 0, %v918
    %v920 = vrot.slane %v648, %v919
    %v921 = vlaneseq
    %v922 = vshrl.u32 %v921, 7
    %v923 = vsub.s32 0, %v922
    %v924 = vrot.slane %v649, %v923
    %v925 = vlaneseq
    %v926 = vshrl.u32 %v925, 7
    %v927 = vsub.s32 0, %v926
    %v928 = vrot.slane %v650, %v927
    %v929 = vlaneseq
    %v930 = vshrl.u32 %v929, 7
    %v931 = vsub.s32 0, %v930
    %v932 = vrot.slane %v651, %v931
    %v933 = vlaneseq
    %v934 = vshrl.u32 %v933, 7
    %v935 = vsub.s32 0, %v934
    %v936 = vrot.slane %v652, %v935
    %v937 = vlaneseq
    %v938 = vshrl.u32 %v937, 7
    %v939 = vsub.s32 0, %v938
    %v940 = vrot.slane %v653, %v939
    %v941 = vlaneseq
    %v942 = vshrl.u32 %v941, 7
    %v943 = vsub.s32 0, %v942
    %v944 = vrot.slane %v654, %v943
    %v945 = vlaneseq
    %v946 = vshrl.u32 %v945, 7
    %v947 = vsub.s32 0, %v946
    %v948 = vrot.slane %v655, %v947
    %v949 = vlaneseq
    %v950 = vshrl.u32 %v949, 7
    %v951 = vsub.s32 0, %v950
    %v952 = vrot.slane %v656, %v951
    %v953 = vlaneseq
    %v954 = vshrl.u32 %v953, 7
    %v955 = vsub.s32 0, %v954
    %v956 = vrot.slane %v657, %v955
    %v957 = vlaneseq
    %v958 = vshrl.u32 %v957, 7
    %v959 = vsub.s32 0, %v958
    %v960 = vrot.slane %v658, %v959
    %v961 = vlaneseq
    %v962 = vshrl.u32 %v961, 7
    %v963 = vsub.s32 0, %v962
    %v964 = vrot.slane %v659, %v963
    %v965 = vlaneseq
    %v966 = vshrl.u32 %v965, 7
    %v967 = vsub.s32 0, %v966
    %v968 = vrot.slane %v660, %v967
    %v969 = vlaneseq
    %v970 = vshrl.u32 %v969, 7
    %v971 = vsub.s32 0, %v970
    %v972 = vrot.slane %v661, %v971
    %v973 = vlaneseq
    %v974 = vshrl.u32 %v973, 7
    %v975 = vsub.s32 0, %v974
    %v976 = vrot.slane %v662, %v975
    %v977 = vlaneseq
    %v978 = vshrl.u32 %v977, 7
    %v979 = vsub.s32 0, %v978
    %v980 = vrot.slane %v663, %v979
    %v981 = vlaneseq
    %v982 = vshrl.u32 %v981, 7
    %v983 = vsub.s32 0, %v982
    %v984 = vrot.slane %v664, %v983
    %vm985 = vcmask 1041409
    %v986 = vsel %vm985, %v736, %v732
    %vm987 = vcmask 1042434
    %v988 = vsel %vm987, %v740, %v986
    %vm989 = vcmask 1043459
    %v990 = vsel %vm989, %v744, %v988
    %vm991 = vcmask 1044484
    %v992 = vsel %vm991, %v748, %v990
    %vm993 = vcmask 1045509
    %v994 = vsel %vm993, %v752, %v992
    %vm995 = vcmask 1046534
    %v996 = vsel %vm995, %v756, %v994
    %vm997 = vcmask 1047559
    %v998 = vsel %vm997, %v760, %v996
    %v999 = vsel %vm985, %v768, %v764
    %v1000 = vsel %vm987, %v772, %v999
    %v1001 = vsel %vm989, %v776, %v1000
    %v1002 = vsel %vm991, %v780, %v1001
    %v1003 = vsel %vm993, %v784, %v1002
    %v1004 = vsel %vm995, %v788, %v1003
    %v1005 = vsel %vm997, %v792, %v1004
    %v1006 = vsel %vm985, %v800, %v796
    %v1007 = vsel %vm987, %v804, %v1006
    %v1008 = vsel %vm989, %v808, %v1007
    %v1009 = vsel %vm991, %v812, %v1008
    %v1010 = vsel %vm993, %v816, %v1009
    %v1011 = vsel %vm995, %v820, %v1010
    %v1012 = vsel %vm997, %v824, %v1011
    %v1013 = vsel %vm985, %v832, %v828
    %v1014 = vsel %vm987, %v836, %v1013
    %v1015 = vsel %vm989, %v840, %v1014
    %v1016 = vsel %vm991, %v844, %v1015
    %v1017 = vsel %vm993, %v848, %v1016
    %v1018 = vsel %vm995, %v852, %v1017
    %v1019 = vsel %vm997, %v856, %v1018
    %v1020 = vsel %vm985, %v864, %v860
    %v1021 = vsel %vm987, %v868, %v1020
    %v1022 = vsel %vm989, %v872, %v1021
    %v1023 = vsel %vm991, %v876, %v1022
    %v1024 = vsel %vm993, %v880, %v1023
    %v1025 = vsel %vm995, %v884, %v1024
    %v1026 = vsel %vm997, %v888, %v1025
    %v1027 = vsel %vm985, %v896, %v892
    %v1028 = vsel %vm987, %v900, %v1027
    %v1029 = vsel %vm989, %v904, %v1028
    %v1030 = vsel %vm991, %v908, %v1029
    %v1031 = vsel %vm993, %v912, %v1030
    %v1032 = vsel %vm995, %v916, %v1031
    %v1033 = vsel %vm997, %v920, %v1032
    %v1034 = vsel %vm985, %v928, %v924
    %v1035 = vsel %vm987, %v932, %v1034
    %v1036 = vsel %vm989, %v936, %v1035
    %v1037 = vsel %vm991, %v940, %v1036
    %v1038 = vsel %vm993, %v944, %v1037
    %v1039 = vsel %vm995, %v948, %v1038
    %v1040 = vsel %vm997, %v952, %v1039
    %v1041 = vsel %vm985, %v960, %v956
    %v1042 = vsel %vm987, %v964, %v1041
    %v1043 = vsel %vm989, %v968, %v1042
    %v1044 = vsel %vm991, %v972, %v1043
    %v1045 = vsel %vm993, %v976, %v1044
    %v1046 = vsel %vm995, %v980, %v1045
    %v1047 = vsel %vm997, %v984, %v1046
    %vm1056 = vcmask 64512
    %1057 = vst.msk [vmem:[#allocation2] sm:$0xff] %vm1056, %v998
    %1058 = vst.msk [vmem:[#allocation2 + $0x8] sm:$0xff] %vm1056, %v1005
    %1059 = vst.msk [vmem:[#allocation2 + $0x10] sm:$0xff] %vm1056, %v1012
    %1060 = vst.msk [vmem:[#allocation2 + $0x18] sm:$0xff] %vm1056, %v1019
    %1061 = vst.msk [vmem:[#allocation2 + $0x20] sm:$0xff] %vm1056, %v1026
    %1062 = vst.msk [vmem:[#allocation2 + $0x28] sm:$0xff] %vm1056, %v1033
    %1063 = vst.msk [vmem:[#allocation2 + $0x30] sm:$0xff] %vm1056, %v1040
    %1064 = vst.msk [vmem:[#allocation2 + $0x38] sm:$0xff] %vm1056, %v1047
    // Predicated region
    $region6: #{tpu_custom_call.1} parent=1 // pred_check
      _
    $region7: #{tpu_custom_call.1} parent=1 // pred_check_branch
      %1066 = sbr.rel (0) target = $region9
    $region8: #{tpu_custom_call.1} parent=1 // pred_region
      %s1068 = ssub.s32 1024, 1024
      %1069 = vsyncadd [#allocation3], %s1068
      %s1070 = sshll.u32 [#allocation2], 4
      %s1071 = int_to_ptr.vmem [resolvable:$true] %s1070
      %1076 = dma.vmem_to_hbm [thread:$0]  %s1071, 1024, %s1, [#allocation3], 128, 128, 8
    $region9: #{tpu_custom_call.1} parent=1 // pred_fallthru
      _
    // Predicated region
    $region10: #{tpu_custom_call.1} parent=1 // pred_check
      _
    $region11: #{tpu_custom_call.1} parent=1 // pred_check_branch
      %1078 = sbr.rel (0) target = $region13
    $region12: #{tpu_custom_call.1} parent=1 // pred_region
      %1079 = dma.done [#allocation3], 1024
    $region13: #{tpu_custom_call.1} parent=1 // pred_fallthru
      _
    %1080 = vsyncpa [#allocation3], 1

</llo_original>
